<compile_context>
chip_gen: v7x
topology: tpu7x:2x2x1
jax: 0.10.0
libtpu: 0.0.40
codegen_flags: <defaults>
</compile_context>

<pallas_src>
import functools
import math

import jax
import jax.numpy as jnp
from jax.experimental import pallas as pl
from jax.experimental.pallas import tpu as pltpu


def _round_up(n, m):
    return ((n + m - 1) // m) * m


# ----------------------------------------------------------------------------
# Kernel
# ----------------------------------------------------------------------------
def fused_conv_pool_kernel(x_ref, w_ref, b_ref, invlen_ref, lens_ref, out_ref, *,
                           max_ws, lout_chunk, num_chunks, compute_dtype):
    """One (batch-block, feature-block) grid step.

    x_ref:      (BB, L_pad, C)    channels-last input, zero-padded along L (compute_dtype)
    w_ref:      (C*max_ws, NFB)   fused, unfold-ordered conv weights (compute_dtype)
    b_ref:      (1, NFB)          fused bias (f32)
    invlen_ref: (1, NFB)          1 / (L - ws + 1) per output column (f32)
    lens_ref:   (1, NFB)          valid conv length per output column (int32)
    out_ref:    (3, BB, NFB)      rows: 0 = max, 1 = max(-conv) ('min'), 2 = mean
    """
    BB, L_pad, C = x_ref.shape
    Kc, NFB = w_ref.shape
    LC = lout_chunk

    w = w_ref[...]                       # hoisted: resident across all Lout chunks
    lens = lens_ref[...]                 # (1, NFB) int32
    neg_inf = jnp.float32(-jnp.inf)

    def body(ci, carry):
        run_max, run_nmax, run_sum = carry
        l0 = ci * LC
        if not isinstance(l0, int):
            l0 = pl.multiple_of(l0, LC)

        # Unfold this Lout chunk in VMEM (k-major, c-minor along the last axis) and
        # run ONE matmul with contraction K = C*max_ws (MXU, f32 accumulation).
        xu = jnp.concatenate(
            [x_ref[:, pl.ds(l0 + k, LC), :] for k in range(max_ws)], axis=-1)
        xu = xu.astype(compute_dtype).reshape(BB * LC, Kc)
        conv = jnp.dot(xu, w, preferred_element_type=jnp.float32)
        conv = conv.reshape(BB, LC, NFB)

        # Validity mask: built once as 2-D, broadcast over batch and all three
        # reductions (different L - ws + 1 per window size; also masks Lout padding).
        pos = l0 + jax.lax.broadcasted_iota(jnp.int32, (LC, NFB), 0)
        valid = (pos < lens)[None]                                   # (1, LC, NFB)

        run_max = jnp.maximum(run_max,
                              jnp.max(jnp.where(valid, conv, neg_inf), axis=1))
        run_nmax = jnp.maximum(run_nmax,
                               jnp.max(jnp.where(valid, -conv, neg_inf), axis=1))
        run_sum = run_sum + jnp.sum(jnp.where(valid, conv, 0.0), axis=1)
        return run_max, run_nmax, run_sum

    init = (jnp.full((BB, NFB), neg_inf, jnp.float32),
            jnp.full((BB, NFB), neg_inf, jnp.float32),
            jnp.zeros((BB, NFB), jnp.float32))
    if num_chunks <= 2:                  # short static trip count: unroll in Python
        carry = init
        for ci in range(num_chunks):
            carry = body(ci, carry)
    else:                                # long sequences: stream, bounded working set
        carry = jax.lax.fori_loop(0, num_chunks, body, init)
    run_max, run_nmax, run_sum = carry

    # Bias hoisted past the reductions ('min' row is max(-conv): bias flips sign);
    # mean is a multiply by a precomputed reciprocal length.
    b = b_ref[...]                       # (1, NFB) f32
    out_ref[0] = run_max + b
    out_ref[1] = run_nmax - b
    out_ref[2] = run_sum * invlen_ref[...] + b


# ----------------------------------------------------------------------------
# Wrapper
# ----------------------------------------------------------------------------
def _pick_nf_block(NFp, cap=512):
    nfb = min(NFp, cap)
    nfb = max(128, (nfb // 128) * 128)
    while NFp % nfb:
        nfb -= 128
    return nfb


def _pick_lout_chunk(Lout, cap=128):
    return min(_round_up(Lout, 8), cap)


def _vmem_tile_bytes(shape, dtype):
    """Conservative VMEM footprint of one tile after (sublane, lane) padding."""
    shape = tuple(shape)
    if len(shape) < 2:
        shape = (1,) * (2 - len(shape)) + shape
    itemsize = jnp.dtype(dtype).itemsize
    packing = max(1, 4 // itemsize)
    lead = 1
    for d in shape[:-2]:
        lead *= d
    sub = _round_up(shape[-2], 8 * packing)
    lane = _round_up(shape[-1], 128)
    return lead * sub * lane * itemsize


def fused_conv_pool(x_pad, w_flat, b_cat, inv_lens, lens, *, max_ws, lout_chunk,
                    num_chunks, compute_dtype, batch_block=8, nf_block=None):
    """x_pad: (B_pad, L_pad, C); w_flat: (C*max_ws, NFp); b_cat/inv_lens: f32 (1, NFp);
    lens: int32 (1, NFp).  Returns (3, B_pad, NFp) f32 rows [max, max(-conv), mean]."""
    B_pad, L_pad, C = x_pad.shape
    Kc, NFp = w_flat.shape
    BB = batch_block
    NFB = _pick_nf_block(NFp) if nf_block is None else nf_block
    assert B_pad % BB == 0 and BB % 8 == 0 and NFp % NFB == 0 and NFB % 128 == 0

    grid = (B_pad // BB, NFp // NFB)     # both parallel; NF axis innermost so the
                                         # x block stays resident across NF blocks.

    # VMEM budget: double-buffered inputs/outputs + streaming working set (+ headroom).
    est = 2 * (_vmem_tile_bytes((BB, L_pad, C), x_pad.dtype)
               + _vmem_tile_bytes((Kc, NFB), w_flat.dtype)
               + 3 * _vmem_tile_bytes((1, NFB), jnp.float32))
    est += 2 * _vmem_tile_bytes((3, BB, NFB), jnp.float32)
    est += 4 * _vmem_tile_bytes((BB, lout_chunk, NFB), jnp.float32)      # conv + temps
    est += 2 * _vmem_tile_bytes((BB * lout_chunk, Kc), compute_dtype)    # unfolded chunk
    est += 3 * _vmem_tile_bytes((BB, NFB), jnp.float32)                  # running stats
    vmem_limit = int(min(max(est + (8 << 20), 32 << 20), 64 << 20))      # v7x-safe cap

    Lout_pad = num_chunks * lout_chunk
    cost = pl.CostEstimate(
        flops=2 * B_pad * Lout_pad * Kc * NFp,
        transcendentals=0,
        bytes_accessed=(x_pad.size * x_pad.dtype.itemsize
                        + w_flat.size * w_flat.dtype.itemsize
                        + (b_cat.size + inv_lens.size + lens.size) * 4
                        + 3 * B_pad * NFp * 4),
    )

    kern = functools.partial(fused_conv_pool_kernel, max_ws=max_ws,
                             lout_chunk=lout_chunk, num_chunks=num_chunks,
                             compute_dtype=compute_dtype)
    return pl.pallas_call(
        kern,
        out_shape=jax.ShapeDtypeStruct((3, B_pad, NFp), jnp.float32),
        grid_spec=pltpu.PrefetchScalarGridSpec(
            num_scalar_prefetch=0,
            grid=grid,
            in_specs=[
                pl.BlockSpec((BB, L_pad, C), lambda i, j: (i, 0, 0)),
                pl.BlockSpec((Kc, NFB), lambda i, j: (0, j)),
                pl.BlockSpec((1, NFB), lambda i, j: (0, j)),
                pl.BlockSpec((1, NFB), lambda i, j: (0, j)),
                pl.BlockSpec((1, NFB), lambda i, j: (0, j)),
            ],
            out_specs=pl.BlockSpec((3, BB, NFB), lambda i, j: (0, i, j)),
        ),
        compiler_params=pltpu.CompilerParams(
            dimension_semantics=("parallel", "parallel"),
            vmem_limit_bytes=vmem_limit),
        cost_estimate=cost,
    )(x_pad, w_flat, b_cat, inv_lens, lens)


def block_a_forward(x, params, wss, poolings, *, compute_dtype=jnp.bfloat16):
    """x: (B, C, L) NCL.  params: list of (W (F, C, ws), b (F,)) matching wss.
    Returns (B, n_poolings, n_wss, F), matching BlockA.forward."""
    B, C, L = x.shape
    F = params[0][0].shape[0]
    n_wss = len(wss)
    max_ws, min_ws = max(wss), min(wss)
    Lout = L - min_ws + 1                         # largest conv length over all ws

    LC = _pick_lout_chunk(Lout)                   # Lout streaming chunk (multiple of 8)
    Lout_pad = _round_up(Lout, LC)
    num_chunks = Lout_pad // LC
    L_pad = Lout_pad + max_ws - 1                 # every shifted slice stays in-bounds

    NF = n_wss * F
    NFp = _round_up(NF, 128)                      # lane-dense output width
    BB = 8                                        # multiple of 8: unmasked output stores
    B_pad = _round_up(B, BB)

    # Channels-last, zero-pad batch & length once, cast to the MXU compute dtype.
    x_lc = jnp.transpose(x, (0, 2, 1))                                   # (B, L, C)
    x_pad = jnp.pad(x_lc, ((0, B_pad - B), (0, L_pad - L), (0, 0)))
    x_pad = x_pad.astype(compute_dtype)                                  # (B_pad, L_pad, C)

    # Fuse all per-ws Conv1d params into one unfold-ordered (C*max_ws, NFp) weight.
    Kc = max_ws * C
    w_flat = jnp.zeros((Kc, NFp), jnp.float32)
    b_cat = jnp.zeros((1, NFp), jnp.float32)
    lens = jnp.full((1, NFp), Lout, jnp.int32)    # padded cols: full length (no -inf/÷0)
    for i, ((W, bvec), ws) in enumerate(zip(params, wss)):
        wf = jnp.transpose(W, (2, 1, 0)).reshape(ws * C, F)              # [k*C+c, f]
        w_flat = w_flat.at[:ws * C, i * F:(i + 1) * F].set(wf.astype(jnp.float32))
        b_cat = b_cat.at[0, i * F:(i + 1) * F].set(bvec.astype(jnp.float32))
        lens = lens.at[0, i * F:(i + 1) * F].set(L - ws + 1)
    inv_lens = 1.0 / lens.astype(jnp.float32)
    w_flat = w_flat.astype(compute_dtype)

    pooled = fused_conv_pool(x_pad, w_flat, b_cat, inv_lens, lens,
                             max_ws=max_ws, lout_chunk=LC, num_chunks=num_chunks,
                             compute_dtype=compute_dtype, batch_block=BB)
    pooled = pooled[:, :B, :NF].reshape(3, B, n_wss, F)                  # un-pad, un-fuse

    pool_row = {'max': 0, 'min': 1, 'mean': 2}
    return jnp.stack([pooled[pool_row[p]] for p in poolings], axis=1)    # (B, n_pool, n_wss, F)


# ----------------------------------------------------------------------------
# Pure-JAX reference (same math, no Pallas) for a correctness check
# ----------------------------------------------------------------------------
def _unfold_ncl(x_ncl, ws):
    B, C, L = x_ncl.shape
    Lout = L - ws + 1
    slices = [x_ncl[:, :, k:k + Lout] for k in range(ws)]                # each (B, C, Lout)
    patches = jnp.stack(slices, axis=-1)                                 # (B, C, Lout, ws)
    patches = jnp.transpose(patches, (0, 2, 1, 3))                       # (B, Lout, C, ws)
    return patches.reshape(B, Lout, C * ws)


def block_a_reference(x, params, wss, poolings):
    B, C, L = x.shape
    F = params[0][0].shape[0]
    pool_fns = {
        'max': lambda c: jnp.max(c, axis=1),
        'min': lambda c: jnp.max(-c, axis=1),    # MyMinPool1d behaviour (no re-negate)
        'mean': lambda c: jnp.mean(c, axis=1),
    }
    convs = []
    for (W, bvec), ws in zip(params, wss):
        xu = _unfold_ncl(x, ws)                                              # (B, Lout, C*ws)
        conv = jnp.einsum('blk,fk->blf', xu, W.reshape(F, C * ws)) + bvec    # (B, Lout, F)
        convs.append(conv)
    return jnp.stack(
        [jnp.stack([pool_fns[p](c) for c in convs], axis=1) for p in poolings],
        axis=1,
    )


# ----------------------------------------------------------------------------
# Demo
# ----------------------------------------------------------------------------
if __name__ == "__main__":
    # Small shapes consistent with the module's forward.
    B, C, L = 2, 8, 16          # batch, word_vector_dim, sequence length
    F = 32                      # filter_number
    wss = [2, 3]
    poolings = ['max', 'min', 'mean']

    key = jax.random.PRNGKey(0)
    keys = jax.random.split(key, 1 + 2 * len(wss))
    x = jax.random.normal(keys[0], (B, C, L), dtype=jnp.float32)

    # Deterministic Conv1d params (PyTorch-style uniform(-1/sqrt(fan_in), 1/sqrt(fan_in))).
    params = []
    for i, ws in enumerate(wss):
        kw, kb = keys[1 + 2 * i], keys[2 + 2 * i]
        bound = 1.0 / math.sqrt(C * ws)
        W = jax.random.uniform(kw, (F, C, ws), minval=-bound, maxval=bound,
                               dtype=jnp.float32)
        bvec = jax.random.uniform(kb, (F,), minval=-bound, maxval=bound,
                                  dtype=jnp.float32)
        params.append((W, bvec))

    ref = block_a_reference(x, params, wss, poolings)

    # f32 compute path: tight check against the pure-JAX reference.
    out_f32 = block_a_forward(x, params, wss, poolings, compute_dtype=jnp.float32)
    out_f32 = jax.block_until_ready(out_f32)
    assert out_f32.shape == (B, len(poolings), len(wss), F), out_f32.shape
    assert jnp.allclose(out_f32, ref, atol=1e-5, rtol=1e-5)

    # Default bf16 MXU path (v6e/v7x fast path): looser tolerance, f32 accumulation.
    out_bf16 = block_a_forward(x, params, wss, poolings)
    out_bf16 = jax.block_until_ready(out_bf16)
    assert out_bf16.shape == (B, len(poolings), len(wss), F), out_bf16.shape
    assert jnp.allclose(out_bf16, ref, atol=5e-2, rtol=5e-2)

    print("KERNEL_OK")
</pallas_src>

<mosaic_0001>
module attributes {stable_mosaic.version = 11 : i64} {
  func.func @fused_conv_pool_kernel(%arg0: i32, %arg1: i32, %arg2: memref<8x18x8xf32, #tpu.memory_space<vmem>>, %arg3: memref<24x128xf32, #tpu.memory_space<vmem>>, %arg4: memref<1x128xf32, #tpu.memory_space<vmem>>, %arg5: memref<1x128xf32, #tpu.memory_space<vmem>>, %arg6: memref<1x128xi32, #tpu.memory_space<vmem>>, %arg7: memref<3x8x128xf32, #tpu.memory_space<vmem>>) attributes {dimension_semantics = [#tpu.dimension_semantics<parallel>, #tpu.dimension_semantics<parallel>], iteration_bounds = array<i64: 1, 1>, scalar_prefetch = 0 : i64, scratch_operands = 0 : i64, tpu.core_type = #tpu.core_type<tc>, window_params = [{transform_indices = @transform_0, window_bounds = array<i64: 8, 18, 8>}, {transform_indices = @transform_1, window_bounds = array<i64: 24, 128>}, {transform_indices = @transform_2, window_bounds = array<i64: 1, 128>}, {transform_indices = @transform_3, window_bounds = array<i64: 1, 128>}, {transform_indices = @transform_4, window_bounds = array<i64: 1, 128>}, {transform_indices = @transform_5, window_bounds = array<i64: 3, 8, 128>}]} {
    %c0 = arith.constant 0 : index
    %c0_0 = arith.constant 0 : index
    %0 = vector.load %arg3[%c0, %c0_0] : memref<24x128xf32, #tpu.memory_space<vmem>>, vector<24x128xf32>
    %c0_1 = arith.constant 0 : index
    %c0_2 = arith.constant 0 : index
    %1 = vector.load %arg6[%c0_1, %c0_2] : memref<1x128xi32, #tpu.memory_space<vmem>>, vector<1x128xi32>
    %cst = arith.constant 0xFF800000 : f32
    %2 = vector.broadcast %cst : f32 to vector<8x128xf32>
    %cst_3 = arith.constant 0xFF800000 : f32
    %3 = vector.broadcast %cst_3 : f32 to vector<8x128xf32>
    %cst_4 = arith.constant 0.000000e+00 : f32
    %4 = vector.broadcast %cst_4 : f32 to vector<8x128xf32>
    %c0_5 = arith.constant 0 : index
    %c0_6 = arith.constant 0 : index
    %c0_7 = arith.constant 0 : index
    %5 = vector.load %arg2[%c0_5, %c0_6, %c0_7] : memref<8x18x8xf32, #tpu.memory_space<vmem>>, vector<8x16x8xf32>
    %c0_8 = arith.constant 0 : index
    %c1 = arith.constant 1 : index
    %c0_9 = arith.constant 0 : index
    %6 = vector.load %arg2[%c0_8, %c1, %c0_9] : memref<8x18x8xf32, #tpu.memory_space<vmem>>, vector<8x16x8xf32>
    %c0_10 = arith.constant 0 : index
    %c2 = arith.constant 2 : index
    %c0_11 = arith.constant 0 : index
    %7 = vector.load %arg2[%c0_10, %c2, %c0_11] : memref<8x18x8xf32, #tpu.memory_space<vmem>>, vector<8x16x8xf32>
    %8 = tpu.concatenate %5, %6, %7 in 2 : vector<8x16x8xf32>, vector<8x16x8xf32>, vector<8x16x8xf32> -> vector<8x16x24xf32>
    %9 = vector.shape_cast %8 : vector<8x16x24xf32> to vector<128x24xf32>
    %cst_12 = arith.constant dense<0.000000e+00> : vector<128x128xf32>
    %10 = tpu.matmul %9, %0, %cst_12 {dimension_numbers = #tpu.dot_dimension_numbers<[1], [0], [0], [1], [0, 0, 1, 1], [], []>} : vector<128x24xf32>, vector<24x128xf32>, vector<128x128xf32> -> vector<128x128xf32>
    %11 = vector.shape_cast %10 : vector<128x128xf32> to vector<8x16x128xf32>
    %12 = tpu.iota {dimensions = array<i32: 0>} : vector<16x128xi32>
    %c0_i32 = arith.constant 0 : i32
    %13 = vector.broadcast %c0_i32 : i32 to vector<16x128xi32>
    %14 = arith.addi %13, %12 : vector<16x128xi32>
    %15 = vector.broadcast %1 : vector<1x128xi32> to vector<16x128xi32>
    %16 = arith.cmpi slt, %14, %15 : vector<16x128xi32>
    %17 = vector.shape_cast %16 : vector<16x128xi1> to vector<1x16x128xi1>
    %cst_13 = arith.constant 0xFF800000 : f32
    %18 = vector.shape_cast %17 : vector<1x16x128xi1> to vector<1x16x128xi1>
    %19 = vector.broadcast %18 : vector<1x16x128xi1> to vector<8x16x128xi1>
    %20 = vector.broadcast %cst_13 : f32 to vector<8x16x128xf32>
    %21 = arith.select %19, %11, %20 : vector<8x16x128xi1>, vector<8x16x128xf32>
    %cst_14 = arith.constant dense<0xFF800000> : vector<8x128xf32>
    %22 = vector.multi_reduction <maximumf>, %21, %cst_14 [1] : vector<8x16x128xf32> to vector<8x128xf32>
    %23 = arith.maximumf %2, %22 : vector<8x128xf32>
    %cst_15 = arith.constant 0.000000e+00 : f32
    %24 = vector.broadcast %cst_15 : f32 to vector<8x16x128xf32>
    %25 = arith.subf %24, %11 : vector<8x16x128xf32>
    %cst_16 = arith.constant 0xFF800000 : f32
    %26 = vector.shape_cast %17 : vector<1x16x128xi1> to vector<1x16x128xi1>
    %27 = vector.broadcast %26 : vector<1x16x128xi1> to vector<8x16x128xi1>
    %28 = vector.broadcast %cst_16 : f32 to vector<8x16x128xf32>
    %29 = arith.select %27, %25, %28 : vector<8x16x128xi1>, vector<8x16x128xf32>
    %cst_17 = arith.constant dense<0xFF800000> : vector<8x128xf32>
    %30 = vector.multi_reduction <maximumf>, %29, %cst_17 [1] : vector<8x16x128xf32> to vector<8x128xf32>
    %31 = arith.maximumf %3, %30 : vector<8x128xf32>
    %cst_18 = arith.constant 0.000000e+00 : f32
    %32 = vector.shape_cast %17 : vector<1x16x128xi1> to vector<1x16x128xi1>
    %33 = vector.broadcast %32 : vector<1x16x128xi1> to vector<8x16x128xi1>
    %34 = vector.broadcast %cst_18 : f32 to vector<8x16x128xf32>
    %35 = arith.select %33, %11, %34 : vector<8x16x128xi1>, vector<8x16x128xf32>
    %cst_19 = arith.constant dense<0.000000e+00> : vector<8x128xf32>
    %36 = vector.multi_reduction <add>, %35, %cst_19 [1] : vector<8x16x128xf32> to vector<8x128xf32>
    %37 = arith.addf %4, %36 : vector<8x128xf32>
    %c0_20 = arith.constant 0 : index
    %c0_21 = arith.constant 0 : index
    %38 = vector.load %arg4[%c0_20, %c0_21] : memref<1x128xf32, #tpu.memory_space<vmem>>, vector<1x128xf32>
    %39 = vector.broadcast %38 : vector<1x128xf32> to vector<8x128xf32>
    %40 = arith.addf %23, %39 : vector<8x128xf32>
    %c0_22 = arith.constant 0 : index
    %c0_23 = arith.constant 0 : index
    %c0_24 = arith.constant 0 : index
    %41 = vector.load %arg7[%c0_22, %c0_23, %c0_24] : memref<3x8x128xf32, #tpu.memory_space<vmem>>, vector<1x8x128xf32>
    %42 = vector.shape_cast %41 : vector<1x8x128xf32> to vector<8x128xf32>
    %43 = vector.shape_cast %40 : vector<8x128xf32> to vector<1x8x128xf32>
    tpu.vector_store %arg7[%c0_22, %c0_23, %c0_24], %43 {strides = array<i32>} : memref<3x8x128xf32, #tpu.memory_space<vmem>>, vector<1x8x128xf32>,
    %44 = vector.broadcast %38 : vector<1x128xf32> to vector<8x128xf32>
    %45 = arith.subf %31, %44 : vector<8x128xf32>
    %c1_25 = arith.constant 1 : index
    %c0_26 = arith.constant 0 : index
    %c0_27 = arith.constant 0 : index
    %46 = vector.load %arg7[%c1_25, %c0_26, %c0_27] : memref<3x8x128xf32, #tpu.memory_space<vmem>>, vector<1x8x128xf32>
    %47 = vector.shape_cast %46 : vector<1x8x128xf32> to vector<8x128xf32>
    %48 = vector.shape_cast %45 : vector<8x128xf32> to vector<1x8x128xf32>
    tpu.vector_store %arg7[%c1_25, %c0_26, %c0_27], %48 {strides = array<i32>} : memref<3x8x128xf32, #tpu.memory_space<vmem>>, vector<1x8x128xf32>,
    %c0_28 = arith.constant 0 : index
    %c0_29 = arith.constant 0 : index
    %49 = vector.load %arg5[%c0_28, %c0_29] : memref<1x128xf32, #tpu.memory_space<vmem>>, vector<1x128xf32>
    %50 = vector.broadcast %49 : vector<1x128xf32> to vector<8x128xf32>
    %51 = arith.mulf %37, %50 : vector<8x128xf32>
    %52 = vector.broadcast %38 : vector<1x128xf32> to vector<8x128xf32>
    %53 = arith.addf %51, %52 : vector<8x128xf32>
    %c2_30 = arith.constant 2 : index
    %c0_31 = arith.constant 0 : index
    %c0_32 = arith.constant 0 : index
    %54 = vector.load %arg7[%c2_30, %c0_31, %c0_32] : memref<3x8x128xf32, #tpu.memory_space<vmem>>, vector<1x8x128xf32>
    %55 = vector.shape_cast %54 : vector<1x8x128xf32> to vector<8x128xf32>
    %56 = vector.shape_cast %53 : vector<8x128xf32> to vector<1x8x128xf32>
    tpu.vector_store %arg7[%c2_30, %c0_31, %c0_32], %56 {strides = array<i32>} : memref<3x8x128xf32, #tpu.memory_space<vmem>>, vector<1x8x128xf32>,
    return
  }
  func.func @transform_0(%arg0: i32, %arg1: i32) -> (i32, i32, i32) {
    %c0_i32 = arith.constant 0 : i32
    %c0_i32_0 = arith.constant 0 : i32
    %c0_i32_1 = arith.constant 0 : i32
    return %arg0, %c0_i32, %c0_i32_0 : i32, i32, i32
  }
  func.func @transform_1(%arg0: i32, %arg1: i32) -> (i32, i32) {
    %c0_i32 = arith.constant 0 : i32
    %c0_i32_0 = arith.constant 0 : i32
    return %c0_i32, %arg1 : i32, i32
  }
  func.func @transform_2(%arg0: i32, %arg1: i32) -> (i32, i32) {
    %c0_i32 = arith.constant 0 : i32
    %c0_i32_0 = arith.constant 0 : i32
    return %c0_i32, %arg1 : i32, i32
  }
  func.func @transform_3(%arg0: i32, %arg1: i32) -> (i32, i32) {
    %c0_i32 = arith.constant 0 : i32
    %c0_i32_0 = arith.constant 0 : i32
    return %c0_i32, %arg1 : i32, i32
  }
  func.func @transform_4(%arg0: i32, %arg1: i32) -> (i32, i32) {
    %c0_i32 = arith.constant 0 : i32
    %c0_i32_0 = arith.constant 0 : i32
    return %c0_i32, %arg1 : i32, i32
  }
  func.func @transform_5(%arg0: i32, %arg1: i32) -> (i32, i32, i32) {
    %c0_i32 = arith.constant 0 : i32
    %c0_i32_0 = arith.constant 0 : i32
    return %c0_i32, %arg0, %arg1 : i32, i32, i32
  }
}

</mosaic_0001>

<llo_original>
// kernel: tpu_custom_call.1
$region0: #{tpu_custom_call.1}
  #allocation0 [shape = 'u32[]', space=smem, size = 0x4, offset = 0x4, fixed_abs, tag = 'smem constant byte address 0x4 - core index']
  #allocation1 [shape = 'u32[144,128]{1,0:T(1,128)}', space=vmem, size = 0x12000, scoped, tag = 'internal scratch']
  %s0 = inlined_call_operand.vmem [shape: f32[8,18,8], index: 0, kind: input, shape index: {}]
  %s1 = inlined_call_operand.vmem [shape: f32[24,128], index: 1, kind: input, shape index: {}]
  %s2 = inlined_call_operand.vmem [shape: f32[1,128], index: 2, kind: input, shape index: {}]
  %s3 = inlined_call_operand.vmem [shape: f32[1,128], index: 3, kind: input, shape index: {}]
  %s4 = inlined_call_operand.vmem [shape: s32[1,128], index: 4, kind: input, shape index: {}]
  %s5 = inlined_call_operand.hbm [shape: f32[3,8,128], index: 5, kind: output, shape index: {}]
  %s6 = sld [smem:[#allocation0]]
  $region30: #{tpu_custom_call.1} parent=0
    _
  %s8 = ssub.s32 1, %s6
  %s9 = scalar_select 0, %s8, %s6
  $region1: #{tpu_custom_call.1} parent=0
    #allocation2 [shape = 'u8[12288]{0}', space=vmem, size = 0x3000, scoped, tag = 'output window, operand 0, single buffered']
    #allocation3 [shape = 's32[1]{0}', space=sflag, size = 0x4, scoped, tag = 'scoped memory for tpu_custom_call.1']
    %10 = vsyncpa [#allocation3], 0
    // Predicated region
    $region2: #{tpu_custom_call.1} parent=1 // pred_check
      _
    $region3: #{tpu_custom_call.1} parent=1 // pred_check_branch
      %12 = sbr.rel (0) target = $region5
    $region4: #{tpu_custom_call.1} parent=1 // pred_region
      _
    $region5: #{tpu_custom_call.1} parent=1 // pred_fallthru
      _
    // Predicated region
    $region6: #{tpu_custom_call.1} parent=1 // pred_check
      _
    $region7: #{tpu_custom_call.1} parent=1 // pred_check_branch
      %14 = sbr.rel (0) target = $region9
    $region8: #{tpu_custom_call.1} parent=1 // pred_region
      _
    $region9: #{tpu_custom_call.1} parent=1 // pred_fallthru
      _
    // Predicated region
    $region10: #{tpu_custom_call.1} parent=1 // pred_check
      _
    $region11: #{tpu_custom_call.1} parent=1 // pred_check_branch
      %16 = sbr.rel (0) target = $region13
    $region12: #{tpu_custom_call.1} parent=1 // pred_region
      _
    $region13: #{tpu_custom_call.1} parent=1 // pred_fallthru
      _
    // Predicated region
    $region14: #{tpu_custom_call.1} parent=1 // pred_check
      _
    $region15: #{tpu_custom_call.1} parent=1 // pred_check_branch
      %18 = sbr.rel (0) target = $region17
    $region16: #{tpu_custom_call.1} parent=1 // pred_region
      _
    $region17: #{tpu_custom_call.1} parent=1 // pred_fallthru
      _
    // Predicated region
    $region18: #{tpu_custom_call.1} parent=1 // pred_check
      _
    $region19: #{tpu_custom_call.1} parent=1 // pred_check_branch
      %20 = sbr.rel (0) target = $region21
    $region20: #{tpu_custom_call.1} parent=1 // pred_region
      _
    $region21: #{tpu_custom_call.1} parent=1 // pred_fallthru
      _
    %v21 = vld [vmem:[%s1] sm:$0xff]
    %v22 = vld [vmem:[%s1 + $0x8] sm:$0xff]
    %v23 = vld [vmem:[%s1 + $0x10] sm:$0xff]
    %v24 = vld [vmem:[%s4] sm:$0x1]
    %v25 = vld [vmem:[%s0] sm:$0xff]
    %v26 = vld [vmem:[%s0 + $0x8] sm:$0xff]
    %v27 = vld [vmem:[%s0 + $0x18] sm:$0xff]
    %v28 = vld [vmem:[%s0 + $0x20] sm:$0xff]
    %v29 = vld [vmem:[%s0 + $0x30] sm:$0xff]
    %v30 = vld [vmem:[%s0 + $0x38] sm:$0xff]
    %v31 = vld [vmem:[%s0 + $0x48] sm:$0xff]
    %v32 = vld [vmem:[%s0 + $0x50] sm:$0xff]
    %v33 = vld [vmem:[%s0 + $0x60] sm:$0xff]
    %v34 = vld [vmem:[%s0 + $0x68] sm:$0xff]
    %v35 = vld [vmem:[%s0 + $0x78] sm:$0xff]
    %v36 = vld [vmem:[%s0 + $0x80] sm:$0xff]
    %v37 = vld [vmem:[%s0 + $0x90] sm:$0xff]
    %v38 = vld [vmem:[%s0 + $0x98] sm:$0xff]
    %v39 = vld [vmem:[%s0 + $0xa8] sm:$0xff]
    %v40 = vld [vmem:[%s0 + $0xb0] sm:$0xff]
    %v41 = vld [vmem:[%s0 + $0x1] sm:$0xff]
    %v42 = vld [vmem:[%s0 + $0x9] sm:$0xff]
    %v43 = vld [vmem:[%s0 + $0x19] sm:$0xff]
    %v44 = vld [vmem:[%s0 + $0x21] sm:$0xff]
    %v45 = vld [vmem:[%s0 + $0x31] sm:$0xff]
    %v46 = vld [vmem:[%s0 + $0x39] sm:$0xff]
    %v47 = vld [vmem:[%s0 + $0x49] sm:$0xff]
    %v48 = vld [vmem:[%s0 + $0x51] sm:$0xff]
    %v49 = vld [vmem:[%s0 + $0x61] sm:$0xff]
    %v50 = vld [vmem:[%s0 + $0x69] sm:$0xff]
    %v51 = vld [vmem:[%s0 + $0x79] sm:$0xff]
    %v52 = vld [vmem:[%s0 + $0x81] sm:$0xff]
    %v53 = vld [vmem:[%s0 + $0x91] sm:$0xff]
    %v54 = vld [vmem:[%s0 + $0x99] sm:$0xff]
    %v55 = vld [vmem:[%s0 + $0xa9] sm:$0xff]
    %v56 = vld [vmem:[%s0 + $0xb1] sm:$0xff]
    %v57 = vld [vmem:[%s0 + $0x2] sm:$0xff]
    %v58 = vld [vmem:[%s0 + $0xa] sm:$0xff]
    %v59 = vld [vmem:[%s0 + $0x1a] sm:$0xff]
    %v60 = vld [vmem:[%s0 + $0x22] sm:$0xff]
    %v61 = vld [vmem:[%s0 + $0x32] sm:$0xff]
    %v62 = vld [vmem:[%s0 + $0x3a] sm:$0xff]
    %v63 = vld [vmem:[%s0 + $0x4a] sm:$0xff]
    %v64 = vld [vmem:[%s0 + $0x52] sm:$0xff]
    %v65 = vld [vmem:[%s0 + $0x62] sm:$0xff]
    %v66 = vld [vmem:[%s0 + $0x6a] sm:$0xff]
    %v67 = vld [vmem:[%s0 + $0x7a] sm:$0xff]
    %v68 = vld [vmem:[%s0 + $0x82] sm:$0xff]
    %v69 = vld [vmem:[%s0 + $0x92] sm:$0xff]
    %v70 = vld [vmem:[%s0 + $0x9a] sm:$0xff]
    %v71 = vld [vmem:[%s0 + $0xaa] sm:$0xff]
    %v72 = vld [vmem:[%s0 + $0xb2] sm:$0xff]
    %89 = vrot.lane.b32.xlu0 %v41, 8
    %v90 = vpop.permute.xlu0 %89
    %91 = vrot.lane.b32.xlu0 %v42, 8
    %v92 = vpop.permute.xlu0 %91
    %93 = vrot.lane.b32.xlu0 %v43, 8
    %v94 = vpop.permute.xlu0 %93
    %95 = vrot.lane.b32.xlu0 %v44, 8
    %v96 = vpop.permute.xlu0 %95
    %97 = vrot.lane.b32.xlu0 %v45, 8
    %v98 = vpop.permute.xlu0 %97
    %99 = vrot.lane.b32.xlu0 %v46, 8
    %v100 = vpop.permute.xlu0 %99
    %101 = vrot.lane.b32.xlu0 %v47, 8
    %v102 = vpop.permute.xlu0 %101
    %103 = vrot.lane.b32.xlu0 %v48, 8
    %v104 = vpop.permute.xlu0 %103
    %105 = vrot.lane.b32.xlu0 %v49, 8
    %v106 = vpop.permute.xlu0 %105
    %107 = vrot.lane.b32.xlu0 %v50, 8
    %v108 = vpop.permute.xlu0 %107
    %109 = vrot.lane.b32.xlu0 %v51, 8
    %v110 = vpop.permute.xlu0 %109
    %111 = vrot.lane.b32.xlu0 %v52, 8
    %v112 = vpop.permute.xlu0 %111
    %113 = vrot.lane.b32.xlu0 %v53, 8
    %v114 = vpop.permute.xlu0 %113
    %115 = vrot.lane.b32.xlu0 %v54, 8
    %v116 = vpop.permute.xlu0 %115
    %117 = vrot.lane.b32.xlu0 %v55, 8
    %v118 = vpop.permute.xlu0 %117
    %119 = vrot.lane.b32.xlu0 %v56, 8
    %v120 = vpop.permute.xlu0 %119
    %153 = vrot.lane.b32.xlu0 %v57, 16
    %v154 = vpop.permute.xlu0 %153
    %155 = vrot.lane.b32.xlu0 %v58, 16
    %v156 = vpop.permute.xlu0 %155
    %157 = vrot.lane.b32.xlu0 %v59, 16
    %v158 = vpop.permute.xlu0 %157
    %159 = vrot.lane.b32.xlu0 %v60, 16
    %v160 = vpop.permute.xlu0 %159
    %161 = vrot.lane.b32.xlu0 %v61, 16
    %v162 = vpop.permute.xlu0 %161
    %163 = vrot.lane.b32.xlu0 %v62, 16
    %v164 = vpop.permute.xlu0 %163
    %165 = vrot.lane.b32.xlu0 %v63, 16
    %v166 = vpop.permute.xlu0 %165
    %167 = vrot.lane.b32.xlu0 %v64, 16
    %v168 = vpop.permute.xlu0 %167
    %169 = vrot.lane.b32.xlu0 %v65, 16
    %v170 = vpop.permute.xlu0 %169
    %171 = vrot.lane.b32.xlu0 %v66, 16
    %v172 = vpop.permute.xlu0 %171
    %173 = vrot.lane.b32.xlu0 %v67, 16
    %v174 = vpop.permute.xlu0 %173
    %175 = vrot.lane.b32.xlu0 %v68, 16
    %v176 = vpop.permute.xlu0 %175
    %177 = vrot.lane.b32.xlu0 %v69, 16
    %v178 = vpop.permute.xlu0 %177
    %179 = vrot.lane.b32.xlu0 %v70, 16
    %v180 = vpop.permute.xlu0 %179
    %181 = vrot.lane.b32.xlu0 %v71, 16
    %v182 = vpop.permute.xlu0 %181
    %183 = vrot.lane.b32.xlu0 %v72, 16
    %v184 = vpop.permute.xlu0 %183
    %vm201 = vcmask 64512
    %v202 = vsel %vm201, %v25, %v90
    %v203 = vsel %vm201, %v26, %v92
    %v204 = vsel %vm201, %v27, %v94
    %v205 = vsel %vm201, %v28, %v96
    %v206 = vsel %vm201, %v29, %v98
    %v207 = vsel %vm201, %v30, %v100
    %v208 = vsel %vm201, %v31, %v102
    %v209 = vsel %vm201, %v32, %v104
    %v210 = vsel %vm201, %v33, %v106
    %v211 = vsel %vm201, %v34, %v108
    %v212 = vsel %vm201, %v35, %v110
    %v213 = vsel %vm201, %v36, %v112
    %v214 = vsel %vm201, %v37, %v114
    %v215 = vsel %vm201, %v38, %v116
    %v216 = vsel %vm201, %v39, %v118
    %v217 = vsel %vm201, %v40, %v120
    %vm218 = vcmask 130048
    %v219 = vsel %vm218, %v202, %v154
    %v220 = vsel %vm218, %v203, %v156
    %v221 = vsel %vm218, %v204, %v158
    %v222 = vsel %vm218, %v205, %v160
    %v223 = vsel %vm218, %v206, %v162
    %v224 = vsel %vm218, %v207, %v164
    %v225 = vsel %vm218, %v208, %v166
    %v226 = vsel %vm218, %v209, %v168
    %v227 = vsel %vm218, %v210, %v170
    %v228 = vsel %vm218, %v211, %v172
    %v229 = vsel %vm218, %v212, %v174
    %v230 = vsel %vm218, %v213, %v176
    %v231 = vsel %vm218, %v214, %v178
    %v232 = vsel %vm218, %v215, %v180
    %v233 = vsel %vm218, %v216, %v182
    %v234 = vsel %vm218, %v217, %v184
    %vm235 = vcmask 195584
    %v237 = vsel %vm235, %v219, 0
    %v240 = vsel %vm235, %v220, 0
    %v243 = vsel %vm235, %v221, 0
    %v246 = vsel %vm235, %v222, 0
    %v249 = vsel %vm235, %v223, 0
    %v252 = vsel %vm235, %v224, 0
    %v255 = vsel %vm235, %v225, 0
    %v258 = vsel %vm235, %v226, 0
    %v261 = vsel %vm235, %v227, 0
    %v264 = vsel %vm235, %v228, 0
    %v267 = vsel %vm235, %v229, 0
    %v270 = vsel %vm235, %v230, 0
    %v273 = vsel %vm235, %v231, 0
    %v276 = vsel %vm235, %v232, 0
    %v279 = vsel %vm235, %v233, 0
    %v282 = vsel %vm235, %v234, 0
    %284 = vmatprep.subr.mxu0 0.0
    %285 = vmatpush1.msra.mxu0 %v21
    %286 = vmatprep.subr.mxu0 0.0
    %287 = vmatpush1.msra.mxu0 %v22
    %288 = vmatprep.subr.mxu0 0.0
    %289 = vmatpush1.msra.mxu0 %v23
    %290 = vmatprep.subr.mxu0 0.0
    %291 = vmatpush1.msra.mxu0 0.0
    %292 = vmatprep.subr.mxu0 0.0
    %293 = vmatpush1.msra.mxu0 0.0
    %294 = vmatprep.subr.mxu0 0.0
    %295 = vmatpush1.msra.mxu0 0.0
    %296 = vmatprep.subr.mxu0 0.0
    %297 = vmatpush1.msra.mxu0 0.0
    %298 = vmatprep.subr.mxu0 0.0
    %299 = vmatpush1.msra.mxu0 0.0
    %300 = vmatprep.subr.mxu0 0.0
    %301 = vmatpush1.msra.mxu0 0.0
    %302 = vmatprep.subr.mxu0 0.0
    %303 = vmatpush1.msra.mxu0 0.0
    %304 = vmatprep.subr.mxu0 0.0
    %305 = vmatpush1.msra.mxu0 0.0
    %306 = vmatprep.subr.mxu0 0.0
    %307 = vmatpush1.msra.mxu0 0.0
    %308 = vmatprep.subr.mxu0 0.0
    %309 = vmatpush1.msra.mxu0 0.0
    %310 = vmatprep.subr.mxu0 0.0
    %311 = vmatpush1.msra.mxu0 0.0
    %312 = vmatprep.subr.mxu0 0.0
    %313 = vmatpush1.msra.mxu0 0.0
    %314 = vmatprep.subr.mxu0 0.0
    %315 = vmatpush1.msra.mxu0 0.0
    %316 = vmatprep.subr.mxu0 0.0
    %317 = vmatpush1.msra.mxu0 0.0
    %318 = vmatprep.subr.mxu0 0.0
    %319 = vmatpush1.msra.mxu0 0.0
    %320 = vmatprep.subr.mxu0 0.0
    %321 = vmatpush1.msra.mxu0 0.0
    %322 = vmatprep.subr.mxu0 0.0
    %323 = vmatpush1.msra.mxu0 0.0
    %324 = vmatprep.subr.mxu0 0.0
    %325 = vmatpush1.msra.mxu0 0.0
    %326 = vmatprep.subr.mxu0 0.0
    %327 = vmatpush1.msra.mxu0 0.0
    %328 = vmatprep.subr.mxu0 0.0
    %329 = vmatpush1.msra.mxu0 0.0
    %330 = vmatprep.subr.mxu0 0.0
    %331 = vmatpush1.msra.mxu0 0.0
    %332 = vmatprep.subr.mxu0 0.0
    %333 = vmatpush1.msra.mxu0 0.0
    %334 = vmatprep.subr.mxu0 0.0
    %335 = vmatpush1.msra.mxu0 0.0
    %336 = vmatprep.subr.mxu0 0.0
    %337 = vmatpush1.msra.mxu0 0.0
    %338 = vmatprep.subr.mxu0 0.0
    %339 = vmatpush1.msra.mxu0 0.0
    %340 = vmatprep.subr.mxu0 0.0
    %341 = vmatpush1.msra.mxu0 0.0
    %342 = vmatprep.subr.mxu0 0.0
    %343 = vmatpush1.msra.mxu0 0.0
    %344 = vmatprep.subr.mxu0 0.0
    %345 = vmatpush1.msra.mxu0 0.0
    %346 = vmatprep.subr.mxu0 0.0
    %347 = vmatpush1.msra.mxu0 0.0
    %348 = vmatprep.mubr.f32.mxu0 0.0
    %349 = vmatmul.mubr.f32.gmra.mrb[0].mxu0 %v237
    %v350 = vpop.f32.mrb[0].mxu0
    %v351 = vadd.f32 0.0, %v350
    %v352 = vpop.f32.mrb[0].mxu0
    %353 = vmatprep.mubr.f32.mxu0 0.0
    %354 = vmatmul.mubr.f32.gmra.mrb[0].mxu0 %v240
    %v355 = vpop.f32.mrb[0].mxu0
    %v356 = vadd.f32 0.0, %v355
    %v357 = vpop.f32.mrb[0].mxu0
    %358 = vmatprep.mubr.f32.mxu0 0.0
    %359 = vmatmul.mubr.f32.gmra.mrb[0].mxu0 %v243
    %v360 = vpop.f32.mrb[0].mxu0
    %v361 = vadd.f32 0.0, %v360
    %v362 = vpop.f32.mrb[0].mxu0
    %363 = vmatprep.mubr.f32.mxu0 0.0
    %364 = vmatmul.mubr.f32.gmra.mrb[0].mxu0 %v246
    %v365 = vpop.f32.mrb[0].mxu0
    %v366 = vadd.f32 0.0, %v365
    %v367 = vpop.f32.mrb[0].mxu0
    %368 = vmatprep.mubr.f32.mxu0 0.0
    %369 = vmatmul.mubr.f32.gmra.mrb[0].mxu0 %v249
    %v370 = vpop.f32.mrb[0].mxu0
    %v371 = vadd.f32 0.0, %v370
    %v372 = vpop.f32.mrb[0].mxu0
    %373 = vmatprep.mubr.f32.mxu0 0.0
    %374 = vmatmul.mubr.f32.gmra.mrb[0].mxu0 %v252
    %v375 = vpop.f32.mrb[0].mxu0
    %v376 = vadd.f32 0.0, %v375
    %v377 = vpop.f32.mrb[0].mxu0
    %378 = vmatprep.mubr.f32.mxu0 0.0
    %379 = vmatmul.mubr.f32.gmra.mrb[0].mxu0 %v255
    %v380 = vpop.f32.mrb[0].mxu0
    %v381 = vadd.f32 0.0, %v380
    %v382 = vpop.f32.mrb[0].mxu0
    %383 = vmatprep.mubr.f32.mxu0 0.0
    %384 = vmatmul.mubr.f32.gmra.mrb[0].mxu0 %v258
    %v385 = vpop.f32.mrb[0].mxu0
    %v386 = vadd.f32 0.0, %v385
    %v387 = vpop.f32.mrb[0].mxu0
    %388 = vmatprep.mubr.f32.mxu0 0.0
    %389 = vmatmul.mubr.f32.gmra.mrb[0].mxu0 %v261
    %v390 = vpop.f32.mrb[0].mxu0
    %v391 = vadd.f32 0.0, %v390
    %v392 = vpop.f32.mrb[0].mxu0
    %393 = vmatprep.mubr.f32.mxu0 0.0
    %394 = vmatmul.mubr.f32.gmra.mrb[0].mxu0 %v264
    %v395 = vpop.f32.mrb[0].mxu0
    %v396 = vadd.f32 0.0, %v395
    %v397 = vpop.f32.mrb[0].mxu0
    %398 = vmatprep.mubr.f32.mxu0 0.0
    %399 = vmatmul.mubr.f32.gmra.mrb[0].mxu0 %v267
    %v400 = vpop.f32.mrb[0].mxu0
    %v401 = vadd.f32 0.0, %v400
    %v402 = vpop.f32.mrb[0].mxu0
    %403 = vmatprep.mubr.f32.mxu0 0.0
    %404 = vmatmul.mubr.f32.gmra.mrb[0].mxu0 %v270
    %v405 = vpop.f32.mrb[0].mxu0
    %v406 = vadd.f32 0.0, %v405
    %v407 = vpop.f32.mrb[0].mxu0
    %408 = vmatprep.mubr.f32.mxu0 0.0
    %409 = vmatmul.mubr.f32.gmra.mrb[0].mxu0 %v273
    %v410 = vpop.f32.mrb[0].mxu0
    %v411 = vadd.f32 0.0, %v410
    %v412 = vpop.f32.mrb[0].mxu0
    %413 = vmatprep.mubr.f32.mxu0 0.0
    %414 = vmatmul.mubr.f32.gmra.mrb[0].mxu0 %v276
    %v415 = vpop.f32.mrb[0].mxu0
    %v416 = vadd.f32 0.0, %v415
    %v417 = vpop.f32.mrb[0].mxu0
    %418 = vmatprep.mubr.f32.mxu0 0.0
    %419 = vmatmul.mubr.f32.gmra.mrb[0].mxu0 %v279
    %v420 = vpop.f32.mrb[0].mxu0
    %v421 = vadd.f32 0.0, %v420
    %v422 = vpop.f32.mrb[0].mxu0
    %423 = vmatprep.mubr.f32.mxu0 0.0
    %424 = vmatmul.mubr.f32.gmra.mrb[0].mxu0 %v282
    %v425 = vpop.f32.mrb[0].mxu0
    %v426 = vadd.f32 0.0, %v425
    %v427 = vpop.f32.mrb[0].mxu0
    %428 = vdwg.mxu0
    %v429 = vlaneseq
    %v430 = vshrl.u32 %v429, 7
    %v431 = vadd.s32 %v430, 8
    %v432 = vlaneseq
    %v433 = vshrl.u32 %v432, 7
    %v434 = vsub.s32 0, %v433
    %v435 = vrot.slane %v24, %v434
    %vm436 = vcmp.lt.s32.totalorder %v430, %v435
    %vm437 = vcmp.lt.s32.totalorder %v431, %v435
    %v438 = vsel %vm436, 1, 0
    %v439 = vsel %vm437, 1, 0
    %vm440 = vcmp.eq.s32.totalorder %v438, 1
    %vm441 = vcmp.eq.s32.totalorder %v439, 1
    %v442 = vsel %vm440, %v351, -inf
    %v443 = vsel %vm441, %v356, -inf
    %v444 = vsel %vm440, %v361, -inf
    %v445 = vsel %vm441, %v366, -inf
    %v446 = vsel %vm440, %v371, -inf
    %v447 = vsel %vm441, %v376, -inf
    %v448 = vsel %vm440, %v381, -inf
    %v449 = vsel %vm441, %v386, -inf
    %v450 = vsel %vm440, %v391, -inf
    %v451 = vsel %vm441, %v396, -inf
    %v452 = vsel %vm440, %v401, -inf
    %v453 = vsel %vm441, %v406, -inf
    %v454 = vsel %vm440, %v411, -inf
    %v455 = vsel %vm441, %v416, -inf
    %v456 = vsel %vm440, %v421, -inf
    %v457 = vsel %vm441, %v426, -inf
    %v458 = vmax.f32 %v442, %v443
    %v459 = vrot.slane %v458, 4
    %v460 = vmax.f32 %v458, %v459
    %v461 = vrot.slane %v460, 2
    %v462 = vmax.f32 %v460, %v461
    %v463 = vrot.slane %v462, 1
    %v464 = vmax.f32 %v462, %v463
    %v465 = vmax.f32 %v444, %v445
    %v466 = vrot.slane %v465, 4
    %v467 = vmax.f32 %v465, %v466
    %v468 = vrot.slane %v467, 2
    %v469 = vmax.f32 %v467, %v468
    %v470 = vrot.slane %v469, 1
    %v471 = vmax.f32 %v469, %v470
    %v472 = vmax.f32 %v446, %v447
    %v473 = vrot.slane %v472, 4
    %v474 = vmax.f32 %v472, %v473
    %v475 = vrot.slane %v474, 2
    %v476 = vmax.f32 %v474, %v475
    %v477 = vrot.slane %v476, 1
    %v478 = vmax.f32 %v476, %v477
    %v479 = vmax.f32 %v448, %v449
    %v480 = vrot.slane %v479, 4
    %v481 = vmax.f32 %v479, %v480
    %v482 = vrot.slane %v481, 2
    %v483 = vmax.f32 %v481, %v482
    %v484 = vrot.slane %v483, 1
    %v485 = vmax.f32 %v483, %v484
    %v486 = vmax.f32 %v450, %v451
    %v487 = vrot.slane %v486, 4
    %v488 = vmax.f32 %v486, %v487
    %v489 = vrot.slane %v488, 2
    %v490 = vmax.f32 %v488, %v489
    %v491 = vrot.slane %v490, 1
    %v492 = vmax.f32 %v490, %v491
    %v493 = vmax.f32 %v452, %v453
    %v494 = vrot.slane %v493, 4
    %v495 = vmax.f32 %v493, %v494
    %v496 = vrot.slane %v495, 2
    %v497 = vmax.f32 %v495, %v496
    %v498 = vrot.slane %v497, 1
    %v499 = vmax.f32 %v497, %v498
    %v500 = vmax.f32 %v454, %v455
    %v501 = vrot.slane %v500, 4
    %v502 = vmax.f32 %v500, %v501
    %v503 = vrot.slane %v502, 2
    %v504 = vmax.f32 %v502, %v503
    %v505 = vrot.slane %v504, 1
    %v506 = vmax.f32 %v504, %v505
    %v507 = vmax.f32 %v456, %v457
    %v508 = vrot.slane %v507, 4
    %v509 = vmax.f32 %v507, %v508
    %v510 = vrot.slane %v509, 2
    %v511 = vmax.f32 %v509, %v510
    %v512 = vrot.slane %v511, 1
    %v513 = vmax.f32 %v511, %v512
    %v514 = vsub.f32 0.0, %v351
    %v515 = vsub.f32 0.0, %v356
    %v516 = vsub.f32 0.0, %v361
    %v517 = vsub.f32 0.0, %v366
    %v518 = vsub.f32 0.0, %v371
    %v519 = vsub.f32 0.0, %v376
    %v520 = vsub.f32 0.0, %v381
    %v521 = vsub.f32 0.0, %v386
    %v522 = vsub.f32 0.0, %v391
    %v523 = vsub.f32 0.0, %v396
    %v524 = vsub.f32 0.0, %v401
    %v525 = vsub.f32 0.0, %v406
    %v526 = vsub.f32 0.0, %v411
    %v527 = vsub.f32 0.0, %v416
    %v528 = vsub.f32 0.0, %v421
    %v529 = vsub.f32 0.0, %v426
    %v530 = vsel %vm440, %v514, -inf
    %v531 = vsel %vm441, %v515, -inf
    %v532 = vsel %vm440, %v516, -inf
    %v533 = vsel %vm441, %v517, -inf
    %v534 = vsel %vm440, %v518, -inf
    %v535 = vsel %vm441, %v519, -inf
    %v536 = vsel %vm440, %v520, -inf
    %v537 = vsel %vm441, %v521, -inf
    %v538 = vsel %vm440, %v522, -inf
    %v539 = vsel %vm441, %v523, -inf
    %v540 = vsel %vm440, %v524, -inf
    %v541 = vsel %vm441, %v525, -inf
    %v542 = vsel %vm440, %v526, -inf
    %v543 = vsel %vm441, %v527, -inf
    %v544 = vsel %vm440, %v528, -inf
    %v545 = vsel %vm441, %v529, -inf
    %v546 = vmax.f32 %v530, %v531
    %v547 = vrot.slane %v546, 4
    %v548 = vmax.f32 %v546, %v547
    %v549 = vrot.slane %v548, 2
    %v550 = vmax.f32 %v548, %v549
    %v551 = vrot.slane %v550, 1
    %v552 = vmax.f32 %v550, %v551
    %v553 = vmax.f32 %v532, %v533
    %v554 = vrot.slane %v553, 4
    %v555 = vmax.f32 %v553, %v554
    %v556 = vrot.slane %v555, 2
    %v557 = vmax.f32 %v555, %v556
    %v558 = vrot.slane %v557, 1
    %v559 = vmax.f32 %v557, %v558
    %v560 = vmax.f32 %v534, %v535
    %v561 = vrot.slane %v560, 4
    %v562 = vmax.f32 %v560, %v561
    %v563 = vrot.slane %v562, 2
    %v564 = vmax.f32 %v562, %v563
    %v565 = vrot.slane %v564, 1
    %v566 = vmax.f32 %v564, %v565
    %v567 = vmax.f32 %v536, %v537
    %v568 = vrot.slane %v567, 4
    %v569 = vmax.f32 %v567, %v568
    %v570 = vrot.slane %v569, 2
    %v571 = vmax.f32 %v569, %v570
    %v572 = vrot.slane %v571, 1
    %v573 = vmax.f32 %v571, %v572
    %v574 = vmax.f32 %v538, %v539
    %v575 = vrot.slane %v574, 4
    %v576 = vmax.f32 %v574, %v575
    %v577 = vrot.slane %v576, 2
    %v578 = vmax.f32 %v576, %v577
    %v579 = vrot.slane %v578, 1
    %v580 = vmax.f32 %v578, %v579
    %v581 = vmax.f32 %v540, %v541
    %v582 = vrot.slane %v581, 4
    %v583 = vmax.f32 %v581, %v582
    %v584 = vrot.slane %v583, 2
    %v585 = vmax.f32 %v583, %v584
    %v586 = vrot.slane %v585, 1
    %v587 = vmax.f32 %v585, %v586
    %v588 = vmax.f32 %v542, %v543
    %v589 = vrot.slane %v588, 4
    %v590 = vmax.f32 %v588, %v589
    %v591 = vrot.slane %v590, 2
    %v592 = vmax.f32 %v590, %v591
    %v593 = vrot.slane %v592, 1
    %v594 = vmax.f32 %v592, %v593
    %v595 = vmax.f32 %v544, %v545
    %v596 = vrot.slane %v595, 4
    %v597 = vmax.f32 %v595, %v596
    %v598 = vrot.slane %v597, 2
    %v599 = vmax.f32 %v597, %v598
    %v600 = vrot.slane %v599, 1
    %v601 = vmax.f32 %v599, %v600
    %v602 = vsel %vm440, %v351, 0.0
    %v603 = vsel %vm441, %v356, 0.0
    %v604 = vsel %vm440, %v361, 0.0
    %v605 = vsel %vm441, %v366, 0.0
    %v606 = vsel %vm440, %v371, 0.0
    %v607 = vsel %vm441, %v376, 0.0
    %v608 = vsel %vm440, %v381, 0.0
    %v609 = vsel %vm441, %v386, 0.0
    %v610 = vsel %vm440, %v391, 0.0
    %v611 = vsel %vm441, %v396, 0.0
    %v612 = vsel %vm440, %v401, 0.0
    %v613 = vsel %vm441, %v406, 0.0
    %v614 = vsel %vm440, %v411, 0.0
    %v615 = vsel %vm441, %v416, 0.0
    %v616 = vsel %vm440, %v421, 0.0
    %v617 = vsel %vm441, %v426, 0.0
    %v618 = vadd.f32 %v602, %v603
    %v619 = vrot.slane %v618, 4
    %v620 = vadd.f32 %v618, %v619
    %v621 = vrot.slane %v620, 2
    %v622 = vadd.f32 %v620, %v621
    %v623 = vrot.slane %v622, 1
    %v624 = vadd.f32 %v622, %v623
    %v625 = vadd.f32 %v604, %v605
    %v626 = vrot.slane %v625, 4
    %v627 = vadd.f32 %v625, %v626
    %v628 = vrot.slane %v627, 2
    %v629 = vadd.f32 %v627, %v628
    %v630 = vrot.slane %v629, 1
    %v631 = vadd.f32 %v629, %v630
    %v632 = vadd.f32 %v606, %v607
    %v633 = vrot.slane %v632, 4
    %v634 = vadd.f32 %v632, %v633
    %v635 = vrot.slane %v634, 2
    %v636 = vadd.f32 %v634, %v635
    %v637 = vrot.slane %v636, 1
    %v638 = vadd.f32 %v636, %v637
    %v639 = vadd.f32 %v608, %v609
    %v640 = vrot.slane %v639, 4
    %v641 = vadd.f32 %v639, %v640
    %v642 = vrot.slane %v641, 2
    %v643 = vadd.f32 %v641, %v642
    %v644 = vrot.slane %v643, 1
    %v645 = vadd.f32 %v643, %v644
    %v646 = vadd.f32 %v610, %v611
    %v647 = vrot.slane %v646, 4
    %v648 = vadd.f32 %v646, %v647
    %v649 = vrot.slane %v648, 2
    %v650 = vadd.f32 %v648, %v649
    %v651 = vrot.slane %v650, 1
    %v652 = vadd.f32 %v650, %v651
    %v653 = vadd.f32 %v612, %v613
    %v654 = vrot.slane %v653, 4
    %v655 = vadd.f32 %v653, %v654
    %v656 = vrot.slane %v655, 2
    %v657 = vadd.f32 %v655, %v656
    %v658 = vrot.slane %v657, 1
    %v659 = vadd.f32 %v657, %v658
    %v660 = vadd.f32 %v614, %v615
    %v661 = vrot.slane %v660, 4
    %v662 = vadd.f32 %v660, %v661
    %v663 = vrot.slane %v662, 2
    %v664 = vadd.f32 %v662, %v663
    %v665 = vrot.slane %v664, 1
    %v666 = vadd.f32 %v664, %v665
    %v667 = vadd.f32 %v616, %v617
    %v668 = vrot.slane %v667, 4
    %v669 = vadd.f32 %v667, %v668
    %v670 = vrot.slane %v669, 2
    %v671 = vadd.f32 %v669, %v670
    %v672 = vrot.slane %v671, 1
    %v673 = vadd.f32 %v671, %v672
    %v674 = vadd.f32 %v624, 0.0
    %v675 = vadd.f32 %v631, 0.0
    %v676 = vadd.f32 %v638, 0.0
    %v677 = vadd.f32 %v645, 0.0
    %v678 = vadd.f32 %v652, 0.0
    %v679 = vadd.f32 %v659, 0.0
    %v680 = vadd.f32 %v666, 0.0
    %v681 = vadd.f32 %v673, 0.0
    %v682 = vld [vmem:[%s2] sm:$0x1]
    %v684 = vlaneseq
    %v685 = vshrl.u32 %v684, 7
    %v686 = vsub.s32 0, %v685
    %v687 = vrot.slane %v682, %v686
    %v689 = vadd.f32 %v464, %v687
    %v690 = vadd.f32 %v471, %v687
    %v691 = vadd.f32 %v478, %v687
    %v692 = vadd.f32 %v485, %v687
    %v693 = vadd.f32 %v492, %v687
    %v694 = vadd.f32 %v499, %v687
    %v695 = vadd.f32 %v506, %v687
    %v696 = vadd.f32 %v513, %v687
    %v705 = vrot.slane %v690, 7
    %vm706 = vcmask 1041409
    %v707 = vsel %vm706, %v705, %v689
    %v708 = vrot.slane %v691, 6
    %vm709 = vcmask 1042434
    %v710 = vsel %vm709, %v708, %v707
    %v711 = vrot.slane %v692, 5
    %vm712 = vcmask 1043459
    %v713 = vsel %vm712, %v711, %v710
    %v714 = vrot.slane %v693, 4
    %vm715 = vcmask 1044484
    %v716 = vsel %vm715, %v714, %v713
    %v717 = vrot.slane %v694, 3
    %vm718 = vcmask 1045509
    %v719 = vsel %vm718, %v717, %v716
    %v720 = vrot.slane %v695, 2
    %vm721 = vcmask 1046534
    %v722 = vsel %vm721, %v720, %v719
    %v723 = vrot.slane %v696, 1
    %vm724 = vcmask 1047559
    %v725 = vsel %vm724, %v723, %v722
    %727 = vst [vmem:[#allocation2] sm:$0xff] %v725
    %v728 = vsub.f32 %v552, %v687
    %v729 = vsub.f32 %v559, %v687
    %v730 = vsub.f32 %v566, %v687
    %v731 = vsub.f32 %v573, %v687
    %v732 = vsub.f32 %v580, %v687
    %v733 = vsub.f32 %v587, %v687
    %v734 = vsub.f32 %v594, %v687
    %v735 = vsub.f32 %v601, %v687
    %v744 = vrot.slane %v729, 7
    %v745 = vsel %vm706, %v744, %v728
    %v746 = vrot.slane %v730, 6
    %v747 = vsel %vm709, %v746, %v745
    %v748 = vrot.slane %v731, 5
    %v749 = vsel %vm712, %v748, %v747
    %v750 = vrot.slane %v732, 4
    %v751 = vsel %vm715, %v750, %v749
    %v752 = vrot.slane %v733, 3
    %v753 = vsel %vm718, %v752, %v751
    %v754 = vrot.slane %v734, 2
    %v755 = vsel %vm721, %v754, %v753
    %v756 = vrot.slane %v735, 1
    %v757 = vsel %vm724, %v756, %v755
    %s759 = scalar_lea.vmem [#allocation2], 8
    %760 = vst [vmem:[%s759] sm:$0xff] %v757
    %v761 = vld [vmem:[%s3] sm:$0x1]
    %v763 = vlaneseq
    %v764 = vshrl.u32 %v763, 7
    %v765 = vsub.s32 0, %v764
    %v766 = vrot.slane %v761, %v765
    %v768 = vmul.f32 %v674, %v766
    %v769 = vmul.f32 %v675, %v766
    %v770 = vmul.f32 %v676, %v766
    %v771 = vmul.f32 %v677, %v766
    %v772 = vmul.f32 %v678, %v766
    %v773 = vmul.f32 %v679, %v766
    %v774 = vmul.f32 %v680, %v766
    %v775 = vmul.f32 %v681, %v766
    %v776 = vadd.f32 %v768, %v687
    %v777 = vadd.f32 %v769, %v687
    %v778 = vadd.f32 %v770, %v687
    %v779 = vadd.f32 %v771, %v687
    %v780 = vadd.f32 %v772, %v687
    %v781 = vadd.f32 %v773, %v687
    %v782 = vadd.f32 %v774, %v687
    %v783 = vadd.f32 %v775, %v687
    %v792 = vrot.slane %v777, 7
    %v793 = vsel %vm706, %v792, %v776
    %v794 = vrot.slane %v778, 6
    %v795 = vsel %vm709, %v794, %v793
    %v796 = vrot.slane %v779, 5
    %v797 = vsel %vm712, %v796, %v795
    %v798 = vrot.slane %v780, 4
    %v799 = vsel %vm715, %v798, %v797
    %v800 = vrot.slane %v781, 3
    %v801 = vsel %vm718, %v800, %v799
    %v802 = vrot.slane %v782, 2
    %v803 = vsel %vm721, %v802, %v801
    %v804 = vrot.slane %v783, 1
    %v805 = vsel %vm724, %v804, %v803
    %s807 = scalar_lea.vmem [#allocation2], 16
    %808 = vst [vmem:[%s807] sm:$0xff] %v805
    // Predicated region
    $region22: #{tpu_custom_call.1} parent=1 // pred_check
      _
    $region23: #{tpu_custom_call.1} parent=1 // pred_check_branch
      %810 = sbr.rel (0) target = $region25
    $region24: #{tpu_custom_call.1} parent=1 // pred_region
      %s812 = ssub.s32 384, 384
      %813 = vsyncadd [#allocation3], %s812
      %s814 = sshll.u32 [#allocation2], 4
      %s815 = int_to_ptr.vmem [resolvable:$true] %s814
      %820 = dma.vmem_to_hbm [thread:$0]  %s815, 384, %s5, [#allocation3], 128, 128, 8
    $region25: #{tpu_custom_call.1} parent=1 // pred_fallthru
      _
    // Predicated region
    $region26: #{tpu_custom_call.1} parent=1 // pred_check
      _
    $region27: #{tpu_custom_call.1} parent=1 // pred_check_branch
      %822 = sbr.rel (0) target = $region29
    $region28: #{tpu_custom_call.1} parent=1 // pred_region
      %823 = dma.done [#allocation3], 384
    $region29: #{tpu_custom_call.1} parent=1 // pred_fallthru
      _
    %824 = vsyncpa [#allocation3], 1

</llo_original>
